<compile_context>
chip_gen: v5e
topology: v5e:2x2
jax: 0.10.0
libtpu: 0.0.40
codegen_flags: <defaults>
</compile_context>

<pallas_src>
import functools

import jax
import jax.numpy as jnp
from jax import lax
from jax.experimental import pallas as pl
from jax.experimental.pallas import tpu as pltpu

LANE = 128


def _round_up(x, m):
    return (x + m - 1) // m * m


def _pick_row_tile(n):
    for tm in (256, 128):
        if n % tm == 0:
            return tm
    return n  # small graphs: a single full-height row tile


# ----------------------------------------------------------------------------
# Fused Pallas kernel: all GINConv layers + JK('cat') + sum pooling + MLP head
# ----------------------------------------------------------------------------
def _fused_gin_kernel(a_ref, x_ref, p_ref,
                      w1_ref, c1_ref, w2_ref, c2_ref,
                      wl1_ref, bl1_ref, wl2_ref, bl2_ref,
                      o_ref, h_scr, z_scr):
    l = pl.program_id(0)                       # layer index (sequential)
    i = pl.program_id(1)                       # node-row tile index
    nl = pl.num_programs(0)
    nt = pl.num_programs(1)
    tm = a_ref.shape[0]

    @pl.when(jnp.logical_and(l == 0, i == 0))
    def _init():
        h_scr[0] = x_ref[...]                  # seed layer-0 input (padded node features)
        z_scr[...] = jnp.zeros_like(z_scr)     # accumulator for pooled @ lin1

    src = lax.rem(l, 2)                        # ping-pong slots: h^{(l-1)} / h^{(l)}
    dst = 1 - src

    # ---- GINConv layer l on this row tile: (A + I) @ h -> [Linear+BN+ReLU] x 2 ----
    a = a_ref[...].astype(jnp.float32)         # bf16 in HBM (exact integer counts)
    agg = jnp.dot(a, h_scr[src], preferred_element_type=jnp.float32)            # [TM, HP]
    h = jnp.dot(agg, w1_ref[0], preferred_element_type=jnp.float32) + c1_ref[0]
    h = jnp.maximum(h, 0.0)                    # BN1 folded into w1/c1
    h = jnp.dot(h, w2_ref[0], preferred_element_type=jnp.float32) + c2_ref[0]
    h = jnp.maximum(h, 0.0)                    # BN2 folded into w2/c2

    row0 = pl.multiple_of(i * tm, tm)
    h_scr[dst, pl.ds(row0, tm), :] = h

    # ---- JK('cat') + sum pooling + lin1, accumulated layer by layer ----
    @pl.when(i == nt - 1)                      # all rows of h^{(l)} are now in VMEM
    def _pool():
        pooled = jnp.dot(p_ref[...], h_scr[dst],
                         preferred_element_type=jnp.float32)                    # [B, HP]
        z_scr[...] += jnp.dot(pooled, wl1_ref[0],
                              preferred_element_type=jnp.float32)

    # ---- classifier head on the very last grid step ----
    @pl.when(jnp.logical_and(l == nl - 1, i == nt - 1))
    def _head():
        z = jnp.maximum(z_scr[...] + bl1_ref[...], 0.0)
        # TODO(synk): dropout is identity (inference); training-mode dropout needs pltpu PRNG.
        o_ref[...] = jnp.dot(z, wl2_ref[...],
                             preferred_element_type=jnp.float32) + bl2_ref[...]


def _vmem_limit_bytes(n, tm, hp, cp, b):
    f32, bf16 = 4, 2
    est = (2 * tm * n * bf16                   # A_hat row tile, double-buffered
           + 2 * n * hp * f32                  # resident node features
           + 2 * max(b, 8) * max(n, LANE) * f32       # pooling matrix
           + 2 * 3 * 2 * hp * hp * f32         # w1 / w2 / lin1 layer blocks, double-buffered
           + 2 * 4 * 8 * hp * f32              # small bias blocks (sublane-padded)
           + 2 * (hp * cp + 8 * cp + max(b, 8) * cp) * f32   # lin2 weight/bias + output
           + 2 * n * hp * f32                  # h ping-pong scratch
           + 8 * hp * f32)                     # head accumulator scratch
    return int(est) + (8 << 20)                # headroom for (8,128) tile padding etc.


def _gin_pallas(a_hat, x_p, pool_mat, w1s, c1s, w2s, c2s, wl1s, bl1, wl2, bl2):
    num_layers, hp, _ = w1s.shape
    n = a_hat.shape[0]
    b = pool_mat.shape[0]
    cp = wl2.shape[1]
    tm = _pick_row_tile(n)
    num_tiles = n // tm

    in_specs = [
        pl.BlockSpec((tm, n), lambda l, i: (i, 0)),         # A_hat row tile (streamed, bf16)
        pl.BlockSpec((n, hp), lambda l, i: (0, 0)),         # padded node features (resident)
        pl.BlockSpec((b, n), lambda l, i: (0, 0)),          # pooling matrix (resident)
        pl.BlockSpec((1, hp, hp), lambda l, i: (l, 0, 0)),  # w1[l]  (BN folded)
        pl.BlockSpec((1, 1, hp), lambda l, i: (l, 0, 0)),   # c1[l]
        pl.BlockSpec((1, hp, hp), lambda l, i: (l, 0, 0)),  # w2[l]  (BN folded)
        pl.BlockSpec((1, 1, hp), lambda l, i: (l, 0, 0)),   # c2[l]
        pl.BlockSpec((1, hp, hp), lambda l, i: (l, 0, 0)),  # lin1 row block for layer l (JK cat)
        pl.BlockSpec((1, hp), lambda l, i: (0, 0)),         # lin1 bias
        pl.BlockSpec((hp, cp), lambda l, i: (0, 0)),        # lin2 weight
        pl.BlockSpec((1, cp), lambda l, i: (0, 0)),         # lin2 bias
    ]
    out_spec = pl.BlockSpec((b, cp), lambda l, i: (0, 0))

    return pl.pallas_call(
        _fused_gin_kernel,
        out_shape=jax.ShapeDtypeStruct((b, cp), jnp.float32),
        grid_spec=pltpu.PrefetchScalarGridSpec(
            num_scalar_prefetch=0,
            grid=(num_layers, num_tiles),
            in_specs=in_specs,
            out_specs=out_spec,
            scratch_shapes=[
                pltpu.VMEM((2, n, hp), jnp.float32),   # h^{(l)} ping-pong buffer
                pltpu.VMEM((b, hp), jnp.float32),      # head pre-activation accumulator
            ],
        ),
        compiler_params=pltpu.CompilerParams(
            # both axes carry cross-iteration state in (per-core) VMEM scratch -> sequential
            dimension_semantics=("arbitrary", "arbitrary"),
            vmem_limit_bytes=_vmem_limit_bytes(n, tm, hp, cp, b),
        ),
    )(a_hat, x_p, pool_mat, w1s, c1s, w2s, c2s, wl1s, bl1, wl2, bl2)


# ----------------------------------------------------------------------------
# Parameter construction (deterministic, synthetic) — unfolded "PyTorch-like" params
# ----------------------------------------------------------------------------
def _init_linear(key, fan_in, fan_out):
    kw, kb = jax.random.split(key)
    bound = 1.0 / jnp.sqrt(jnp.float32(fan_in))
    w = jax.random.uniform(kw, (fan_in, fan_out), jnp.float32, -bound, bound)
    b = jax.random.uniform(kb, (1, fan_out), jnp.float32, -bound, bound)
    return w, b


def _init_bn(key, dim, eps=1e-5):
    kg, kb, km, kv = jax.random.split(key, 4)
    gamma = 1.0 + 0.1 * jax.random.normal(kg, (1, dim), jnp.float32)
    beta = 0.1 * jax.random.normal(kb, (1, dim), jnp.float32)
    mean = 0.1 * jax.random.normal(km, (1, dim), jnp.float32)
    var = 1.0 + 0.1 * jnp.abs(jax.random.normal(kv, (1, dim), jnp.float32))
    scale = gamma / jnp.sqrt(var + eps)   # folded BN (eval mode)
    shift = beta - mean * scale
    return scale, shift


def make_gin_params(key, num_features, num_layers, hidden, num_classes):
    params = {"convs": []}
    fin = num_features
    for _ in range(num_layers):
        key, k1, k2, k3, k4 = jax.random.split(key, 5)
        w1, b1 = _init_linear(k1, fin, hidden)
        s1, t1 = _init_bn(k2, hidden)
        w2, b2 = _init_linear(k3, hidden, hidden)
        s2, t2 = _init_bn(k4, hidden)
        params["convs"].append((w1, b1, s1, t1, w2, b2, s2, t2))
        fin = hidden
    key, k1, k2 = jax.random.split(key, 3)
    params["lin1"] = _init_linear(k1, num_layers * hidden, hidden)   # JK 'cat'
    params["lin2"] = _init_linear(k2, hidden, num_classes)
    return params


# ----------------------------------------------------------------------------
# Full forward pass (folding / padding / stacking in JAX, everything hot in Pallas)
# ----------------------------------------------------------------------------
def _fold_bn_linear(w, b, scale, shift):
    # ((x @ w + b) * scale + shift)  ==  x @ (w * scale) + (b * scale + shift)
    return w * scale, b * scale + shift


def _pad2(a, rows, cols):
    return jnp.pad(a, ((0, rows - a.shape[0]), (0, cols - a.shape[1])))


@functools.partial(jax.jit, static_argnames=("num_graphs",))
def gin_forward(params, x, edge_index, batch, num_graphs):
    n, f = x.shape
    hidden = params["convs"][0][4].shape[0]          # w2 is [H, H]
    num_layers = len(params["convs"])
    num_classes = params["lin2"][0].shape[1]

    hp = _round_up(max(hidden, f), LANE)             # padded feature / hidden width
    cp = _round_up(num_classes, LANE)                # padded class width (lane-dense output)

    # dense message-passing operator A_hat[i, j] = #edges j->i, plus self loop (eps = 0)
    src, dst = edge_index[0], edge_index[1]
    a = jnp.zeros((n, n), jnp.float32).at[dst, src].add(1.0)
    a_hat = (a + jnp.eye(n, dtype=jnp.float32)).astype(jnp.bfloat16)   # counts exact in bf16

    # sum-pooling matrix P[g, i] = 1 if batch[i] == g
    pool_mat = jax.nn.one_hot(batch, num_graphs, dtype=jnp.float32).T

    # fold eval-mode BN into the linears, pad feature dims to lane width, stack over layers
    w1s, c1s, w2s, c2s = [], [], [], []
    for (w1, b1, s1, t1, w2, b2, s2, t2) in params["convs"]:
        w1f, c1 = _fold_bn_linear(w1, b1, s1, t1)
        w2f, c2 = _fold_bn_linear(w2, b2, s2, t2)
        w1s.append(_pad2(w1f, hp, hp))
        c1s.append(_pad2(c1, 1, hp))
        w2s.append(_pad2(w2f, hp, hp))
        c2s.append(_pad2(c2, 1, hp))
    w1s, c1s = jnp.stack(w1s), jnp.stack(c1s)
    w2s, c2s = jnp.stack(w2s), jnp.stack(c2s)

    # head: lin1 rows follow the JK 'cat' layout [layer0 | layer1 | ...] -> re-block to [L, HP, HP]
    w_lin1, b_lin1 = params["lin1"]
    wl1s = jnp.stack([_pad2(w_lin1[l * hidden:(l + 1) * hidden, :], hp, hp)
                      for l in range(num_layers)])
    bl1 = _pad2(b_lin1, 1, hp)
    w_lin2, b_lin2 = params["lin2"]
    wl2 = _pad2(w_lin2, hp, cp)
    bl2 = _pad2(b_lin2, 1, cp)

    x_p = _pad2(x.astype(jnp.float32), n, hp)

    out_p = _gin_pallas(a_hat, x_p, pool_mat, w1s, c1s, w2s, c2s, wl1s, bl1, wl2, bl2)
    return out_p[:, :num_classes]


if __name__ == "__main__":
    # small synthetic graph batch: 2 graphs, 32 nodes total, 4 input features
    NUM_FEATURES = 4
    NUM_LAYERS = 3
    HIDDEN = 32
    NUM_CLASSES = 3
    N_NODES = 32
    N_EDGES = 64
    N_GRAPHS = 2

    key = jax.random.PRNGKey(0)
    key, kx, ke = jax.random.split(key, 3)
    x = jax.random.normal(kx, (N_NODES, NUM_FEATURES), jnp.float32)
    edge_index = jax.random.randint(ke, (2, N_EDGES), 0, N_NODES, jnp.int32)
    batch = jnp.concatenate([
        jnp.zeros((N_NODES // 2,), jnp.int32),
        jnp.ones((N_NODES - N_NODES // 2,), jnp.int32),
    ])

    params = make_gin_params(key, NUM_FEATURES, NUM_LAYERS, HIDDEN, NUM_CLASSES)

    out = gin_forward(params, x, edge_index, batch, N_GRAPHS)
    jax.block_until_ready(out)
    assert out.shape == (N_GRAPHS, NUM_CLASSES)
    print("KERNEL_OK")
</pallas_src>

<mosaic_0001>
module attributes {stable_mosaic.version = 11 : i64} {
  func.func @_fused_gin_kernel(%arg0: i32, %arg1: i32, %arg2: memref<32x32xbf16, #tpu.memory_space<vmem>>, %arg3: memref<32x128xf32, #tpu.memory_space<vmem>>, %arg4: memref<2x32xf32, #tpu.memory_space<vmem>>, %arg5: memref<1x128x128xf32, #tpu.memory_space<vmem>>, %arg6: memref<1x1x128xf32, #tpu.memory_space<vmem>>, %arg7: memref<1x128x128xf32, #tpu.memory_space<vmem>>, %arg8: memref<1x1x128xf32, #tpu.memory_space<vmem>>, %arg9: memref<1x128x128xf32, #tpu.memory_space<vmem>>, %arg10: memref<1x128xf32, #tpu.memory_space<vmem>>, %arg11: memref<128x128xf32, #tpu.memory_space<vmem>>, %arg12: memref<1x128xf32, #tpu.memory_space<vmem>>, %arg13: memref<2x128xf32, #tpu.memory_space<vmem>>, %arg14: memref<2x32x128xf32, #tpu.memory_space<vmem>>, %arg15: memref<2x128xf32, #tpu.memory_space<vmem>>) attributes {dimension_semantics = [#tpu.dimension_semantics<arbitrary>, #tpu.dimension_semantics<arbitrary>], iteration_bounds = array<i64: 3, 1>, scalar_prefetch = 0 : i64, scratch_operands = 2 : i64, tpu.core_type = #tpu.core_type<tc>, window_params = [{transform_indices = @transform_0, window_bounds = array<i64: 32, 32>}, {pipeline_mode = #tpu.pipeline_mode<synchronous>, transform_indices = @transform_1, window_bounds = array<i64: 32, 128>}, {pipeline_mode = #tpu.pipeline_mode<synchronous>, transform_indices = @transform_2, window_bounds = array<i64: 2, 32>}, {transform_indices = @transform_3, window_bounds = array<i64: 1, 128, 128>}, {transform_indices = @transform_4, window_bounds = array<i64: 1, 1, 128>}, {transform_indices = @transform_5, window_bounds = array<i64: 1, 128, 128>}, {transform_indices = @transform_6, window_bounds = array<i64: 1, 1, 128>}, {transform_indices = @transform_7, window_bounds = array<i64: 1, 128, 128>}, {pipeline_mode = #tpu.pipeline_mode<synchronous>, transform_indices = @transform_8, window_bounds = array<i64: 1, 128>}, {pipeline_mode = #tpu.pipeline_mode<synchronous>, transform_indices = @transform_9, window_bounds = array<i64: 128, 128>}, {pipeline_mode = #tpu.pipeline_mode<synchronous>, transform_indices = @transform_10, window_bounds = array<i64: 1, 128>}, {pipeline_mode = #tpu.pipeline_mode<synchronous>, transform_indices = @transform_11, window_bounds = array<i64: 2, 128>}]} {
    %c0_i32 = arith.constant 0 : i32
    %0 = arith.cmpi eq, %arg0, %c0_i32 : i32
    %c0_i32_0 = arith.constant 0 : i32
    %1 = arith.cmpi eq, %arg1, %c0_i32_0 : i32
    %2 = arith.andi %0, %1 : i1
    %3 = arith.extui %2 : i1 to i32
    %c0_i32_1 = arith.constant 0 : i32
    %4 = arith.cmpi ne, %3, %c0_i32_1 : i32
    scf.if %4 {
      %c0_27 = arith.constant 0 : index
      %c0_28 = arith.constant 0 : index
      %46 = vector.load %arg3[%c0_27, %c0_28] : memref<32x128xf32, #tpu.memory_space<vmem>>, vector<32x128xf32>
      %c0_29 = arith.constant 0 : index
      %c0_30 = arith.constant 0 : index
      %c0_31 = arith.constant 0 : index
      %47 = vector.load %arg14[%c0_29, %c0_30, %c0_31] : memref<2x32x128xf32, #tpu.memory_space<vmem>>, vector<1x32x128xf32>
      %48 = vector.shape_cast %47 : vector<1x32x128xf32> to vector<32x128xf32>
      %49 = vector.shape_cast %46 : vector<32x128xf32> to vector<1x32x128xf32>
      tpu.vector_store %arg14[%c0_29, %c0_30, %c0_31], %49 {strides = array<i32>} : memref<2x32x128xf32, #tpu.memory_space<vmem>>, vector<1x32x128xf32>,
      %cst_32 = arith.constant 0.000000e+00 : f32
      %50 = vector.broadcast %cst_32 : f32 to vector<2x128xf32>
      %c0_33 = arith.constant 0 : index
      %c0_34 = arith.constant 0 : index
      %51 = vector.load %arg15[%c0_33, %c0_34] : memref<2x128xf32, #tpu.memory_space<vmem>>, vector<2x128xf32>
      tpu.vector_store %arg15[%c0_33, %c0_34], %50 {strides = array<i32>} : memref<2x128xf32, #tpu.memory_space<vmem>>, vector<2x128xf32>,
    } else {
    }
    %c2_i32 = arith.constant 2 : i32
    %5 = arith.remsi %arg0, %c2_i32 : i32
    %c1_i32 = arith.constant 1 : i32
    %6 = arith.subi %c1_i32, %5 : i32
    %c0 = arith.constant 0 : index
    %c0_2 = arith.constant 0 : index
    %7 = vector.load %arg2[%c0, %c0_2] : memref<32x32xbf16, #tpu.memory_space<vmem>>, vector<32x32xbf16>
    %8 = arith.extf %7 : vector<32x32xbf16> to vector<32x32xf32>
    %9 = arith.index_cast %5 : i32 to index
    %c0_3 = arith.constant 0 : index
    %c0_4 = arith.constant 0 : index
    %10 = vector.load %arg14[%9, %c0_3, %c0_4] : memref<2x32x128xf32, #tpu.memory_space<vmem>>, vector<1x32x128xf32>
    %11 = vector.shape_cast %10 : vector<1x32x128xf32> to vector<32x128xf32>
    %cst = arith.constant dense<0.000000e+00> : vector<32x128xf32>
    %12 = tpu.matmul %8, %11, %cst {dimension_numbers = #tpu.dot_dimension_numbers<[1], [0], [0], [1], [0, 0, 1, 1], [], []>} : vector<32x32xf32>, vector<32x128xf32>, vector<32x128xf32> -> vector<32x128xf32>
    %c0_5 = arith.constant 0 : index
    %c0_6 = arith.constant 0 : index
    %c0_7 = arith.constant 0 : index
    %13 = vector.load %arg5[%c0_5, %c0_6, %c0_7] : memref<1x128x128xf32, #tpu.memory_space<vmem>>, vector<1x128x128xf32>
    %14 = vector.shape_cast %13 : vector<1x128x128xf32> to vector<128x128xf32>
    %cst_8 = arith.constant dense<0.000000e+00> : vector<32x128xf32>
    %15 = tpu.matmul %12, %14, %cst_8 {dimension_numbers = #tpu.dot_dimension_numbers<[1], [0], [0], [1], [0, 0, 1, 1], [], []>} : vector<32x128xf32>, vector<128x128xf32>, vector<32x128xf32> -> vector<32x128xf32>
    %c0_9 = arith.constant 0 : index
    %c0_10 = arith.constant 0 : index
    %c0_11 = arith.constant 0 : index
    %16 = vector.load %arg6[%c0_9, %c0_10, %c0_11] : memref<1x1x128xf32, #tpu.memory_space<vmem>>, vector<1x1x128xf32>
    %17 = vector.shape_cast %16 : vector<1x1x128xf32> to vector<1x128xf32>
    %18 = vector.broadcast %17 : vector<1x128xf32> to vector<32x128xf32>
    %19 = arith.addf %15, %18 : vector<32x128xf32>
    %cst_12 = arith.constant 0.000000e+00 : f32
    %20 = vector.broadcast %cst_12 : f32 to vector<32x128xf32>
    %21 = arith.maximumf %19, %20 : vector<32x128xf32>
    %c0_13 = arith.constant 0 : index
    %c0_14 = arith.constant 0 : index
    %c0_15 = arith.constant 0 : index
    %22 = vector.load %arg7[%c0_13, %c0_14, %c0_15] : memref<1x128x128xf32, #tpu.memory_space<vmem>>, vector<1x128x128xf32>
    %23 = vector.shape_cast %22 : vector<1x128x128xf32> to vector<128x128xf32>
    %cst_16 = arith.constant dense<0.000000e+00> : vector<32x128xf32>
    %24 = tpu.matmul %21, %23, %cst_16 {dimension_numbers = #tpu.dot_dimension_numbers<[1], [0], [0], [1], [0, 0, 1, 1], [], []>} : vector<32x128xf32>, vector<128x128xf32>, vector<32x128xf32> -> vector<32x128xf32>
    %c0_17 = arith.constant 0 : index
    %c0_18 = arith.constant 0 : index
    %c0_19 = arith.constant 0 : index
    %25 = vector.load %arg8[%c0_17, %c0_18, %c0_19] : memref<1x1x128xf32, #tpu.memory_space<vmem>>, vector<1x1x128xf32>
    %26 = vector.shape_cast %25 : vector<1x1x128xf32> to vector<1x128xf32>
    %27 = vector.broadcast %26 : vector<1x128xf32> to vector<32x128xf32>
    %28 = arith.addf %24, %27 : vector<32x128xf32>
    %cst_20 = arith.constant 0.000000e+00 : f32
    %29 = vector.broadcast %cst_20 : f32 to vector<32x128xf32>
    %30 = arith.maximumf %28, %29 : vector<32x128xf32>
    %c32_i32 = arith.constant 32 : i32
    %31 = arith.muli %arg1, %c32_i32 : i32
    %32 = tpu.assume_multiple %31, 32 : i32
    %33 = arith.index_cast %6 : i32 to index
    %34 = arith.index_cast %32 : i32 to index
    %c0_21 = arith.constant 0 : index
    %35 = vector.load %arg14[%33, %34, %c0_21] : memref<2x32x128xf32, #tpu.memory_space<vmem>>, vector<1x32x128xf32>
    %36 = vector.shape_cast %35 : vector<1x32x128xf32> to vector<32x128xf32>
    %37 = vector.shape_cast %30 : vector<32x128xf32> to vector<1x32x128xf32>
    tpu.vector_store %arg14[%33, %34, %c0_21], %37 {strides = array<i32>} : memref<2x32x128xf32, #tpu.memory_space<vmem>>, vector<1x32x128xf32>,
    %c0_i32_22 = arith.constant 0 : i32
    %38 = arith.cmpi eq, %arg1, %c0_i32_22 : i32
    %39 = arith.extui %38 : i1 to i32
    %c0_i32_23 = arith.constant 0 : i32
    %40 = arith.cmpi ne, %39, %c0_i32_23 : i32
    scf.if %40 {
      %c0_27 = arith.constant 0 : index
      %c0_28 = arith.constant 0 : index
      %46 = vector.load %arg4[%c0_27, %c0_28] : memref<2x32xf32, #tpu.memory_space<vmem>>, vector<2x32xf32>
      %47 = arith.index_cast %6 : i32 to index
      %c0_29 = arith.constant 0 : index
      %c0_30 = arith.constant 0 : index
      %48 = vector.load %arg14[%47, %c0_29, %c0_30] : memref<2x32x128xf32, #tpu.memory_space<vmem>>, vector<1x32x128xf32>
      %49 = vector.shape_cast %48 : vector<1x32x128xf32> to vector<32x128xf32>
      %cst_31 = arith.constant dense<0.000000e+00> : vector<2x128xf32>
      %50 = tpu.matmul %46, %49, %cst_31 {dimension_numbers = #tpu.dot_dimension_numbers<[1], [0], [0], [1], [0, 0, 1, 1], [], []>} : vector<2x32xf32>, vector<32x128xf32>, vector<2x128xf32> -> vector<2x128xf32>
      %c0_32 = arith.constant 0 : index
      %c0_33 = arith.constant 0 : index
      %51 = vector.load %arg15[%c0_32, %c0_33] : memref<2x128xf32, #tpu.memory_space<vmem>>, vector<2x128xf32>
      %c0_34 = arith.constant 0 : index
      %c0_35 = arith.constant 0 : index
      %c0_36 = arith.constant 0 : index
      %52 = vector.load %arg9[%c0_34, %c0_35, %c0_36] : memref<1x128x128xf32, #tpu.memory_space<vmem>>, vector<1x128x128xf32>
      %53 = vector.shape_cast %52 : vector<1x128x128xf32> to vector<128x128xf32>
      %cst_37 = arith.constant dense<0.000000e+00> : vector<2x128xf32>
      %54 = tpu.matmul %50, %53, %cst_37 {dimension_numbers = #tpu.dot_dimension_numbers<[1], [0], [0], [1], [0, 0, 1, 1], [], []>} : vector<2x128xf32>, vector<128x128xf32>, vector<2x128xf32> -> vector<2x128xf32>
      %55 = arith.addf %51, %54 : vector<2x128xf32>
      %c0_38 = arith.constant 0 : index
      %c0_39 = arith.constant 0 : index
      %56 = vector.load %arg15[%c0_38, %c0_39] : memref<2x128xf32, #tpu.memory_space<vmem>>, vector<2x128xf32>
      tpu.vector_store %arg15[%c0_38, %c0_39], %55 {strides = array<i32>} : memref<2x128xf32, #tpu.memory_space<vmem>>, vector<2x128xf32>,
    } else {
    }
    %c2_i32_24 = arith.constant 2 : i32
    %41 = arith.cmpi eq, %arg0, %c2_i32_24 : i32
    %c0_i32_25 = arith.constant 0 : i32
    %42 = arith.cmpi eq, %arg1, %c0_i32_25 : i32
    %43 = arith.andi %41, %42 : i1
    %44 = arith.extui %43 : i1 to i32
    %c0_i32_26 = arith.constant 0 : i32
    %45 = arith.cmpi ne, %44, %c0_i32_26 : i32
    scf.if %45 {
      %c0_27 = arith.constant 0 : index
      %c0_28 = arith.constant 0 : index
      %46 = vector.load %arg15[%c0_27, %c0_28] : memref<2x128xf32, #tpu.memory_space<vmem>>, vector<2x128xf32>
      %c0_29 = arith.constant 0 : index
      %c0_30 = arith.constant 0 : index
      %47 = vector.load %arg10[%c0_29, %c0_30] : memref<1x128xf32, #tpu.memory_space<vmem>>, vector<1x128xf32>
      %48 = vector.broadcast %47 : vector<1x128xf32> to vector<2x128xf32>
      %49 = arith.addf %46, %48 : vector<2x128xf32>
      %cst_31 = arith.constant 0.000000e+00 : f32
      %50 = vector.broadcast %cst_31 : f32 to vector<2x128xf32>
      %51 = arith.maximumf %49, %50 : vector<2x128xf32>
      %c0_32 = arith.constant 0 : index
      %c0_33 = arith.constant 0 : index
      %52 = vector.load %arg11[%c0_32, %c0_33] : memref<128x128xf32, #tpu.memory_space<vmem>>, vector<128x128xf32>
      %cst_34 = arith.constant dense<0.000000e+00> : vector<2x128xf32>
      %53 = tpu.matmul %51, %52, %cst_34 {dimension_numbers = #tpu.dot_dimension_numbers<[1], [0], [0], [1], [0, 0, 1, 1], [], []>} : vector<2x128xf32>, vector<128x128xf32>, vector<2x128xf32> -> vector<2x128xf32>
      %c0_35 = arith.constant 0 : index
      %c0_36 = arith.constant 0 : index
      %54 = vector.load %arg12[%c0_35, %c0_36] : memref<1x128xf32, #tpu.memory_space<vmem>>, vector<1x128xf32>
      %55 = vector.broadcast %54 : vector<1x128xf32> to vector<2x128xf32>
      %56 = arith.addf %53, %55 : vector<2x128xf32>
      %c0_37 = arith.constant 0 : index
      %c0_38 = arith.constant 0 : index
      %57 = vector.load %arg13[%c0_37, %c0_38] : memref<2x128xf32, #tpu.memory_space<vmem>>, vector<2x128xf32>
      tpu.vector_store %arg13[%c0_37, %c0_38], %56 {strides = array<i32>} : memref<2x128xf32, #tpu.memory_space<vmem>>, vector<2x128xf32>,
    } else {
    }
    return
  }
  func.func @transform_0(%arg0: i32, %arg1: i32) -> (i32, i32) {
    %c0_i32 = arith.constant 0 : i32
    %c0_i32_0 = arith.constant 0 : i32
    return %arg1, %c0_i32 : i32, i32
  }
  func.func @transform_1(%arg0: i32, %arg1: i32) -> (i32, i32) {
    %c0_i32 = arith.constant 0 : i32
    %c0_i32_0 = arith.constant 0 : i32
    %c0_i32_1 = arith.constant 0 : i32
    return %c0_i32, %c0_i32_0 : i32, i32
  }
  func.func @transform_2(%arg0: i32, %arg1: i32) -> (i32, i32) {
    %c0_i32 = arith.constant 0 : i32
    %c0_i32_0 = arith.constant 0 : i32
    %c0_i32_1 = arith.constant 0 : i32
    return %c0_i32, %c0_i32_0 : i32, i32
  }
  func.func @transform_3(%arg0: i32, %arg1: i32) -> (i32, i32, i32) {
    %c0_i32 = arith.constant 0 : i32
    %c0_i32_0 = arith.constant 0 : i32
    %c0_i32_1 = arith.constant 0 : i32
    return %arg0, %c0_i32, %c0_i32_0 : i32, i32, i32
  }
  func.func @transform_4(%arg0: i32, %arg1: i32) -> (i32, i32, i32) {
    %c0_i32 = arith.constant 0 : i32
    %c0_i32_0 = arith.constant 0 : i32
    %c0_i32_1 = arith.constant 0 : i32
    return %arg0, %c0_i32, %c0_i32_0 : i32, i32, i32
  }
  func.func @transform_5(%arg0: i32, %arg1: i32) -> (i32, i32, i32) {
    %c0_i32 = arith.constant 0 : i32
    %c0_i32_0 = arith.constant 0 : i32
    %c0_i32_1 = arith.constant 0 : i32
    return %arg0, %c0_i32, %c0_i32_0 : i32, i32, i32
  }
  func.func @transform_6(%arg0: i32, %arg1: i32) -> (i32, i32, i32) {
    %c0_i32 = arith.constant 0 : i32
    %c0_i32_0 = arith.constant 0 : i32
    %c0_i32_1 = arith.constant 0 : i32
    return %arg0, %c0_i32, %c0_i32_0 : i32, i32, i32
  }
  func.func @transform_7(%arg0: i32, %arg1: i32) -> (i32, i32, i32) {
    %c0_i32 = arith.constant 0 : i32
    %c0_i32_0 = arith.constant 0 : i32
    %c0_i32_1 = arith.constant 0 : i32
    return %arg0, %c0_i32, %c0_i32_0 : i32, i32, i32
  }
  func.func @transform_8(%arg0: i32, %arg1: i32) -> (i32, i32) {
    %c0_i32 = arith.constant 0 : i32
    %c0_i32_0 = arith.constant 0 : i32
    %c0_i32_1 = arith.constant 0 : i32
    return %c0_i32, %c0_i32_0 : i32, i32
  }
  func.func @transform_9(%arg0: i32, %arg1: i32) -> (i32, i32) {
    %c0_i32 = arith.constant 0 : i32
    %c0_i32_0 = arith.constant 0 : i32
    %c0_i32_1 = arith.constant 0 : i32
    return %c0_i32, %c0_i32_0 : i32, i32
  }
  func.func @transform_10(%arg0: i32, %arg1: i32) -> (i32, i32) {
    %c0_i32 = arith.constant 0 : i32
    %c0_i32_0 = arith.constant 0 : i32
    %c0_i32_1 = arith.constant 0 : i32
    return %c0_i32, %c0_i32_0 : i32, i32
  }
  func.func @transform_11(%arg0: i32, %arg1: i32) -> (i32, i32) {
    %c0_i32 = arith.constant 0 : i32
    %c0_i32_0 = arith.constant 0 : i32
    %c0_i32_1 = arith.constant 0 : i32
    return %c0_i32, %c0_i32_0 : i32, i32
  }
}

</mosaic_0001>

<llo_original>
// kernel: gin_forward.1
$region0: #{gin_forward.1}
  #allocation0 [shape = 'u32[]', space=smem, size = 0x4, offset = 0x4, fixed_abs, tag = 'smem constant byte address 0x4 - core index']
  #allocation1 [shape = 'u32[72,128]{1,0:T(1,128)}', space=vmem, size = 0x9000, scoped, tag = 'internal scratch']
  #allocation2 [shape = 'f32[2,32,128]{2,1,0:T(8,128)}', space=vmem, size = 0x8000, scoped, tag = 'scratch operand']
  #allocation3 [shape = 'f32[2,128]{1,0:T(2,128)}', space=vmem, size = 0x400, scoped, tag = 'scratch operand']
  %s0 = inlined_call_operand.vmem [shape: bf16[32,32], index: 0, kind: input, shape index: {}]
  %s1 = inlined_call_operand.vmem [shape: f32[32,128], index: 1, kind: input, shape index: {}]
  %s2 = inlined_call_operand.vmem [shape: f32[2,32], index: 2, kind: input, shape index: {}]
  %s3 = inlined_call_operand.vmem [shape: f32[3,128,128], index: 3, kind: input, shape index: {}]
  %s4 = inlined_call_operand.vmem [shape: f32[3,1,128], index: 4, kind: input, shape index: {}]
  %s5 = inlined_call_operand.vmem [shape: f32[3,128,128], index: 5, kind: input, shape index: {}]
  %s6 = inlined_call_operand.vmem [shape: f32[3,1,128], index: 6, kind: input, shape index: {}]
  %s7 = inlined_call_operand.vmem [shape: f32[3,128,128], index: 7, kind: input, shape index: {}]
  %s8 = inlined_call_operand.vmem [shape: f32[1,128], index: 8, kind: input, shape index: {}]
  %s9 = inlined_call_operand.vmem [shape: f32[128,128], index: 9, kind: input, shape index: {}]
  %s10 = inlined_call_operand.vmem [shape: f32[1,128], index: 10, kind: input, shape index: {}]
  %s11 = inlined_call_operand.hbm [shape: f32[2,128], index: 11, kind: output, shape index: {}]
  %s12 = sld [smem:[#allocation0]]
  $region89: #{gin_forward.1} parent=0
    _
  %s14 = ssub.s32 1, %s12
  %s15 = scalar_select 0, %s14, %s12
  $region1: #{gin_forward.1} parent=0
    #allocation4 [shape = 'u8[1024]{0}', space=vmem, size = 0x400, scoped, tag = 'output window, operand 0, single buffered']
    #allocation5 [shape = 's32[2]{0}', space=sflag, size = 0x8, scoped, tag = 'scoped memory for gin_forward.1']
    %16 = vsyncpa [#allocation5], 0
    loop: start=0, step=1, limit=5
    $region2: #{gin_forward.1} parent=1 // loop_pre_header
      _
    $region3: #{gin_forward.1} parent=1 // loop_header
      %s18 = sphi 0, %s22
      %p19 = scmp.ge.s32.totalorder %s18, 5
      %s25 = sphi 0, %s37
      %s26 = sphi 0, %s33
      %s27 = sphi 0, %s25
      %s28 = sphi 0, %s26
      %s29 = sphi 0, %s27
      %s30 = sphi 0, %s28
      %s40 = sphi 0, %s42
      %s43 = sphi 0, %s40
      %s44 = sphi 0, %s43
      %s60 = sphi 0, %s44
      %s64 = sphi 0, %s64
      %s66 = sphi 0, %s64
      %s67 = sphi 0, %s66
      %s81 = sphi 0, %s67
      %s85 = sphi 0, %s85
      %s87 = sphi 0, %s85
      %s88 = sphi 0, %s87
      %s102 = sphi 0, %s88
      %s108 = sphi 0, %s110
      %s111 = sphi 0, %s108
      %s112 = sphi 0, %s111
      %s128 = sphi 0, %s112
      %s134 = sphi 0, %s136
      %s137 = sphi 0, %s134
      %s138 = sphi 0, %s137
      %s154 = sphi 0, %s138
      %s160 = sphi 0, %s162
      %s163 = sphi 0, %s160
      %s164 = sphi 0, %s163
      %s180 = sphi 0, %s164
      %s186 = sphi 0, %s188
      %s189 = sphi 0, %s186
      %s190 = sphi 0, %s189
      %s206 = sphi 0, %s190
      %s212 = sphi 0, %s214
      %s215 = sphi 0, %s212
      %s216 = sphi 0, %s215
      %s232 = sphi 0, %s216
      %s236 = sphi 0, %s236
      %s238 = sphi 0, %s236
      %s239 = sphi 0, %s238
      %s253 = sphi 0, %s239
      %s257 = sphi 0, %s257
      %s259 = sphi 0, %s257
      %s260 = sphi 0, %s259
      %s274 = sphi 0, %s260
      %s278 = sphi 0, %s278
      %s280 = sphi 0, %s278
      %s281 = sphi 0, %s280
      %s295 = sphi 0, %s281
      %s299 = sphi 0, %s299
      %s301 = sphi 0, %s299
      %s302 = sphi 0, %s301
      %s316 = sphi 0, %s302
    $region4: #{gin_forward.1} parent=1 // loop_header_branch
      %21 = sbr.rel (%p19) target = $region8
    $region5: #{gin_forward.1} parent=1 // loop_body
      %s23 = ssub.s32 %s18, 1
      %s24 = ssub.s32 %s18, 2
      %s31 = sadd.s32 1, %s26
      %p32 = scmp.ge.s32.totalorder %s31, 1
      %s33 = scalar_select %p32, 0, %s31
      %s34 = sadd.s32 1, %s25
      %s35 = scalar_select %p32, %s34, %s25
      %p36 = scmp.ge.s32.totalorder %s35, 3
      %s37 = scalar_select %p36, 0, %s35
      %s38 = ssub.s32 %s26, %s33
      %p39 = scmp.eq.s32.totalorder %s38, 0
      %s41 = sadd.s32 %s40, 1
      %s42 = scalar_select %p39, %s40, %s41
      %p45 = pneg %p39
      %p46 = scmp.eq.s32.totalorder %s18, 2
      %p47 = por %p45, %p46
      %p48 = scmp.ne.s32.totalorder %s40, %s43
      %p49 = scmp.eq.s32.totalorder %s18, 0
      %p50 = por %p48, %p49
      %p51 = scmp.ne.s32.totalorder %s40, %s43
      %p52 = scmp.eq.s32.totalorder %s23, 2
      %p53 = por %p51, %p52
      %p54 = scmp.ne.s32.totalorder %s43, %s44
      %p55 = scmp.eq.s32.totalorder %s23, 0
      %p56 = por %p54, %p55
      %p57 = scmp.ne.s32.totalorder %s43, %s44
      %p58 = scmp.eq.s32.totalorder %s24, 2
      %p59 = por %p57, %p58
      %p61 = scmp.ne.s32.totalorder %s44, %s60
      %p62 = scmp.eq.s32.totalorder %s24, 0
      %p63 = por %p61, %p62
      %s65 = sadd.s32 %s64, 1
      %p68 = scmp.eq.s32.totalorder %s18, 2
      %p69 = scmp.ne.s32.totalorder %s64, %s66
      %p70 = scmp.eq.s32.totalorder %s18, 0
      %p71 = por %p69, %p70
      %p72 = scmp.ne.s32.totalorder %s64, %s66
      %p73 = scmp.eq.s32.totalorder %s23, 2
      %p74 = por %p72, %p73
      %p75 = scmp.ne.s32.totalorder %s66, %s67
      %p76 = scmp.eq.s32.totalorder %s23, 0
      %p77 = por %p75, %p76
      %p78 = scmp.ne.s32.totalorder %s66, %s67
      %p79 = scmp.eq.s32.totalorder %s24, 2
      %p80 = por %p78, %p79
      %p82 = scmp.ne.s32.totalorder %s67, %s81
      %p83 = scmp.eq.s32.totalorder %s24, 0
      %p84 = por %p82, %p83
      %s86 = sadd.s32 %s85, 1
      %p89 = scmp.eq.s32.totalorder %s18, 2
      %p90 = scmp.ne.s32.totalorder %s85, %s87
      %p91 = scmp.eq.s32.totalorder %s18, 0
      %p92 = por %p90, %p91
      %p93 = scmp.ne.s32.totalorder %s85, %s87
      %p94 = scmp.eq.s32.totalorder %s23, 2
      %p95 = por %p93, %p94
      %p96 = scmp.ne.s32.totalorder %s87, %s88
      %p97 = scmp.eq.s32.totalorder %s23, 0
      %p98 = por %p96, %p97
      %p99 = scmp.ne.s32.totalorder %s87, %s88
      %p100 = scmp.eq.s32.totalorder %s24, 2
      %p101 = por %p99, %p100
      %p103 = scmp.ne.s32.totalorder %s88, %s102
      %p104 = scmp.eq.s32.totalorder %s24, 0
      %p105 = por %p103, %p104
      %s106 = ssub.s32 %s25, %s37
      %p107 = scmp.eq.s32.totalorder %s106, 0
      %s109 = sadd.s32 %s108, 1
      %s110 = scalar_select %p107, %s108, %s109
      %p113 = pneg %p107
      %p114 = scmp.eq.s32.totalorder %s18, 2
      %p115 = por %p113, %p114
      %p116 = scmp.ne.s32.totalorder %s108, %s111
      %p117 = scmp.eq.s32.totalorder %s18, 0
      %p118 = por %p116, %p117
      %p119 = scmp.ne.s32.totalorder %s108, %s111
      %p120 = scmp.eq.s32.totalorder %s23, 2
      %p121 = por %p119, %p120
      %p122 = scmp.ne.s32.totalorder %s111, %s112
      %p123 = scmp.eq.s32.totalorder %s23, 0
      %p124 = por %p122, %p123
      %p125 = scmp.ne.s32.totalorder %s111, %s112
      %p126 = scmp.eq.s32.totalorder %s24, 2
      %p127 = por %p125, %p126
      %p129 = scmp.ne.s32.totalorder %s112, %s128
      %p130 = scmp.eq.s32.totalorder %s24, 0
      %p131 = por %p129, %p130
      %s132 = ssub.s32 %s25, %s37
      %p133 = scmp.eq.s32.totalorder %s132, 0
      %s135 = sadd.s32 %s134, 1
      %s136 = scalar_select %p133, %s134, %s135
      %p139 = pneg %p133
      %p140 = scmp.eq.s32.totalorder %s18, 2
      %p141 = por %p139, %p140
      %p142 = scmp.ne.s32.totalorder %s134, %s137
      %p143 = scmp.eq.s32.totalorder %s18, 0
      %p144 = por %p142, %p143
      %p145 = scmp.ne.s32.totalorder %s134, %s137
      %p146 = scmp.eq.s32.totalorder %s23, 2
      %p147 = por %p145, %p146
      %p148 = scmp.ne.s32.totalorder %s137, %s138
      %p149 = scmp.eq.s32.totalorder %s23, 0
      %p150 = por %p148, %p149
      %p151 = scmp.ne.s32.totalorder %s137, %s138
      %p152 = scmp.eq.s32.totalorder %s24, 2
      %p153 = por %p151, %p152
      %p155 = scmp.ne.s32.totalorder %s138, %s154
      %p156 = scmp.eq.s32.totalorder %s24, 0
      %p157 = por %p155, %p156
      %s158 = ssub.s32 %s25, %s37
      %p159 = scmp.eq.s32.totalorder %s158, 0
      %s161 = sadd.s32 %s160, 1
      %s162 = scalar_select %p159, %s160, %s161
      %p165 = pneg %p159
      %p166 = scmp.eq.s32.totalorder %s18, 2
      %p167 = por %p165, %p166
      %p168 = scmp.ne.s32.totalorder %s160, %s163
      %p169 = scmp.eq.s32.totalorder %s18, 0
      %p170 = por %p168, %p169
      %p171 = scmp.ne.s32.totalorder %s160, %s163
      %p172 = scmp.eq.s32.totalorder %s23, 2
      %p173 = por %p171, %p172
      %p174 = scmp.ne.s32.totalorder %s163, %s164
      %p175 = scmp.eq.s32.totalorder %s23, 0
      %p176 = por %p174, %p175
      %p177 = scmp.ne.s32.totalorder %s163, %s164
      %p178 = scmp.eq.s32.totalorder %s24, 2
      %p179 = por %p177, %p178
      %p181 = scmp.ne.s32.totalorder %s164, %s180
      %p182 = scmp.eq.s32.totalorder %s24, 0
      %p183 = por %p181, %p182
      %s184 = ssub.s32 %s25, %s37
      %p185 = scmp.eq.s32.totalorder %s184, 0
      %s187 = sadd.s32 %s186, 1
      %s188 = scalar_select %p185, %s186, %s187
      %p191 = pneg %p185
      %p192 = scmp.eq.s32.totalorder %s18, 2
      %p193 = por %p191, %p192
      %p194 = scmp.ne.s32.totalorder %s186, %s189
      %p195 = scmp.eq.s32.totalorder %s18, 0
      %p196 = por %p194, %p195
      %p197 = scmp.ne.s32.totalorder %s186, %s189
      %p198 = scmp.eq.s32.totalorder %s23, 2
      %p199 = por %p197, %p198
      %p200 = scmp.ne.s32.totalorder %s189, %s190
      %p201 = scmp.eq.s32.totalorder %s23, 0
      %p202 = por %p200, %p201
      %p203 = scmp.ne.s32.totalorder %s189, %s190
      %p204 = scmp.eq.s32.totalorder %s24, 2
      %p205 = por %p203, %p204
      %p207 = scmp.ne.s32.totalorder %s190, %s206
      %p208 = scmp.eq.s32.totalorder %s24, 0
      %p209 = por %p207, %p208
      %s210 = ssub.s32 %s25, %s37
      %p211 = scmp.eq.s32.totalorder %s210, 0
      %s213 = sadd.s32 %s212, 1
      %s214 = scalar_select %p211, %s212, %s213
      %p217 = pneg %p211
      %p218 = scmp.eq.s32.totalorder %s18, 2
      %p219 = por %p217, %p218
      %p220 = scmp.ne.s32.totalorder %s212, %s215
      %p221 = scmp.eq.s32.totalorder %s18, 0
      %p222 = por %p220, %p221
      %p223 = scmp.ne.s32.totalorder %s212, %s215
      %p224 = scmp.eq.s32.totalorder %s23, 2
      %p225 = por %p223, %p224
      %p226 = scmp.ne.s32.totalorder %s215, %s216
      %p227 = scmp.eq.s32.totalorder %s23, 0
      %p228 = por %p226, %p227
      %p229 = scmp.ne.s32.totalorder %s215, %s216
      %p230 = scmp.eq.s32.totalorder %s24, 2
      %p231 = por %p229, %p230
      %p233 = scmp.ne.s32.totalorder %s216, %s232
      %p234 = scmp.eq.s32.totalorder %s24, 0
      %p235 = por %p233, %p234
      %s237 = sadd.s32 %s236, 1
      %p240 = scmp.eq.s32.totalorder %s18, 2
      %p241 = scmp.ne.s32.totalorder %s236, %s238
      %p242 = scmp.eq.s32.totalorder %s18, 0
      %p243 = por %p241, %p242
      %p244 = scmp.ne.s32.totalorder %s236, %s238
      %p245 = scmp.eq.s32.totalorder %s23, 2
      %p246 = por %p244, %p245
      %p247 = scmp.ne.s32.totalorder %s238, %s239
      %p248 = scmp.eq.s32.totalorder %s23, 0
      %p249 = por %p247, %p248
      %p250 = scmp.ne.s32.totalorder %s238, %s239
      %p251 = scmp.eq.s32.totalorder %s24, 2
      %p252 = por %p250, %p251
      %p254 = scmp.ne.s32.totalorder %s239, %s253
      %p255 = scmp.eq.s32.totalorder %s24, 0
      %p256 = por %p254, %p255
      %s258 = sadd.s32 %s257, 1
      %p261 = scmp.eq.s32.totalorder %s18, 2
      %p262 = scmp.ne.s32.totalorder %s257, %s259
      %p263 = scmp.eq.s32.totalorder %s18, 0
      %p264 = por %p262, %p263
      %p265 = scmp.ne.s32.totalorder %s257, %s259
      %p266 = scmp.eq.s32.totalorder %s23, 2
      %p267 = por %p265, %p266
      %p268 = scmp.ne.s32.totalorder %s259, %s260
      %p269 = scmp.eq.s32.totalorder %s23, 0
      %p270 = por %p268, %p269
      %p271 = scmp.ne.s32.totalorder %s259, %s260
      %p272 = scmp.eq.s32.totalorder %s24, 2
      %p273 = por %p271, %p272
      %p275 = scmp.ne.s32.totalorder %s260, %s274
      %p276 = scmp.eq.s32.totalorder %s24, 0
      %p277 = por %p275, %p276
      %s279 = sadd.s32 %s278, 1
      %p282 = scmp.eq.s32.totalorder %s18, 2
      %p283 = scmp.ne.s32.totalorder %s278, %s280
      %p284 = scmp.eq.s32.totalorder %s18, 0
      %p285 = por %p283, %p284
      %p286 = scmp.ne.s32.totalorder %s278, %s280
      %p287 = scmp.eq.s32.totalorder %s23, 2
      %p288 = por %p286, %p287
      %p289 = scmp.ne.s32.totalorder %s280, %s281
      %p290 = scmp.eq.s32.totalorder %s23, 0
      %p291 = por %p289, %p290
      %p292 = scmp.ne.s32.totalorder %s280, %s281
      %p293 = scmp.eq.s32.totalorder %s24, 2
      %p294 = por %p292, %p293
      %p296 = scmp.ne.s32.totalorder %s281, %s295
      %p297 = scmp.eq.s32.totalorder %s24, 0
      %p298 = por %p296, %p297
      %s300 = sadd.s32 %s299, 1
      %p303 = scmp.eq.s32.totalorder %s18, 2
      %p304 = scmp.ne.s32.totalorder %s299, %s301
      %p305 = scmp.eq.s32.totalorder %s18, 0
      %p306 = por %p304, %p305
      %p307 = scmp.ne.s32.totalorder %s299, %s301
      %p308 = scmp.eq.s32.totalorder %s23, 2
      %p309 = por %p307, %p308
      %p310 = scmp.ne.s32.totalorder %s301, %s302
      %p311 = scmp.eq.s32.totalorder %s23, 0
      %p312 = por %p310, %p311
      %p313 = scmp.ne.s32.totalorder %s301, %s302
      %p314 = scmp.eq.s32.totalorder %s24, 2
      %p315 = por %p313, %p314
      %p317 = scmp.ne.s32.totalorder %s302, %s316
      %p318 = scmp.eq.s32.totalorder %s24, 0
      %p319 = por %p317, %p318
      %p320 = scmp.le.s32.totalorder 1, %s18
      %p321 = scmp.lt.s32.totalorder %s18, 4
      %p322 = pnand %p320, %p321
      %p323 = pneg %p322
      // Predicated region
      $region9: #{gin_forward.1} parent=5 // pred_check
        _
      $region10: #{gin_forward.1} parent=5 // pred_check_branch
        %325 = sbr.rel (%p322) target = $region12
      $region11: #{gin_forward.1} parent=5 // pred_region
        %s326 = ssub.s32 %s18, 1
        // Predicated region
        $region13: #{gin_forward.1} parent=11 // pred_check
          %p327 = pneg %p56
        $region14: #{gin_forward.1} parent=11 // pred_check_branch
          %329 = sbr.rel (%p327) target = $region16
        $region15: #{gin_forward.1} parent=11 // pred_region
          %s330 = smul.u32 4, %s28
          %p331 = scmp.lt.s32.totalorder %s330, 3
          %s332 = scalar_select %p331, %s330, 3
          %s333 = smul.addr %s332, 4
          %s334 = scalar_lea.vmem %s0, %s333
          %s335 = smul.u32 4, %s28
        $region16: #{gin_forward.1} parent=11 // pred_fallthru
          _
        // Predicated region
        $region17: #{gin_forward.1} parent=11 // pred_check
          %p336 = pneg %p77
        $region18: #{gin_forward.1} parent=11 // pred_check_branch
          %338 = sbr.rel (%p336) target = $region20
        $region19: #{gin_forward.1} parent=11 // pred_region
          _
        $region20: #{gin_forward.1} parent=11 // pred_fallthru
          _
        // Predicated region
        $region21: #{gin_forward.1} parent=11 // pred_check
          %p339 = pneg %p98
        $region22: #{gin_forward.1} parent=11 // pred_check_branch
          %341 = sbr.rel (%p339) target = $region24
        $region23: #{gin_forward.1} parent=11 // pred_region
          _
        $region24: #{gin_forward.1} parent=11 // pred_fallthru
          _
        // Predicated region
        $region25: #{gin_forward.1} parent=11 // pred_check
          %p342 = pneg %p249
        $region26: #{gin_forward.1} parent=11 // pred_check_branch
          %344 = sbr.rel (%p342) target = $region28
        $region27: #{gin_forward.1} parent=11 // pred_region
          _
        $region28: #{gin_forward.1} parent=11 // pred_fallthru
          _
        // Predicated region
        $region29: #{gin_forward.1} parent=11 // pred_check
          %p345 = pneg %p270
        $region30: #{gin_forward.1} parent=11 // pred_check_branch
          %347 = sbr.rel (%p345) target = $region32
        $region31: #{gin_forward.1} parent=11 // pred_region
          _
        $region32: #{gin_forward.1} parent=11 // pred_fallthru
          _
        // Predicated region
        $region33: #{gin_forward.1} parent=11 // pred_check
          %p348 = pneg %p291
        $region34: #{gin_forward.1} parent=11 // pred_check_branch
          %350 = sbr.rel (%p348) target = $region36
        $region35: #{gin_forward.1} parent=11 // pred_region
          _
        $region36: #{gin_forward.1} parent=11 // pred_fallthru
          _
      $region12: #{gin_forward.1} parent=5 // pred_fallthru
        _
      %p351 = scmp.lt.s32.totalorder %s18, 3
      // Predicated region
      $region37: #{gin_forward.1} parent=5 // pred_check
        %p352 = pneg %p351
      $region38: #{gin_forward.1} parent=5 // pred_check_branch
        %354 = sbr.rel (%p352) target = $region40
      $region39: #{gin_forward.1} parent=5 // pred_region
        // Predicated region
        $region41: #{gin_forward.1} parent=39 // pred_check
          %p355 = pneg %p118
        $region42: #{gin_forward.1} parent=39 // pred_check_branch
          %357 = sbr.rel (%p355) target = $region44
        $region43: #{gin_forward.1} parent=39 // pred_region
          %p358 = scmp.lt.s32.totalorder %s25, 2
          %s359 = scalar_select %p358, %s25, 2
          %s360 = smul.addr %s359, 16
          %s361 = smul.addr %s360, 8
          %s362 = scalar_lea.vmem %s3, %s361
        $region44: #{gin_forward.1} parent=39 // pred_fallthru
          _
        // Predicated region
        $region45: #{gin_forward.1} parent=39 // pred_check
          %p363 = pneg %p144
        $region46: #{gin_forward.1} parent=39 // pred_check_branch
          %365 = sbr.rel (%p363) target = $region48
        $region47: #{gin_forward.1} parent=39 // pred_region
          %p366 = scmp.lt.s32.totalorder %s25, 2
          %s367 = scalar_select %p366, %s25, 2
          %s368 = scalar_lea.vmem %s4, %s367
        $region48: #{gin_forward.1} parent=39 // pred_fallthru
          _
        // Predicated region
        $region49: #{gin_forward.1} parent=39 // pred_check
          %p369 = pneg %p170
        $region50: #{gin_forward.1} parent=39 // pred_check_branch
          %371 = sbr.rel (%p369) target = $region52
        $region51: #{gin_forward.1} parent=39 // pred_region
          %p372 = scmp.lt.s32.totalorder %s25, 2
          %s373 = scalar_select %p372, %s25, 2
          %s374 = smul.addr %s373, 16
          %s375 = smul.addr %s374, 8
          %s376 = scalar_lea.vmem %s5, %s375
        $region52: #{gin_forward.1} parent=39 // pred_fallthru
          _
        // Predicated region
        $region53: #{gin_forward.1} parent=39 // pred_check
          %p377 = pneg %p196
        $region54: #{gin_forward.1} parent=39 // pred_check_branch
          %379 = sbr.rel (%p377) target = $region56
        $region55: #{gin_forward.1} parent=39 // pred_region
          %p380 = scmp.lt.s32.totalorder %s25, 2
          %s381 = scalar_select %p380, %s25, 2
          %s382 = scalar_lea.vmem %s6, %s381
        $region56: #{gin_forward.1} parent=39 // pred_fallthru
          _
        // Predicated region
        $region57: #{gin_forward.1} parent=39 // pred_check
          %p383 = pneg %p222
        $region58: #{gin_forward.1} parent=39 // pred_check_branch
          %385 = sbr.rel (%p383) target = $region60
        $region59: #{gin_forward.1} parent=39 // pred_region
          %p386 = scmp.lt.s32.totalorder %s25, 2
          %s387 = scalar_select %p386, %s25, 2
          %s388 = smul.addr %s387, 16
          %s389 = smul.addr %s388, 8
          %s390 = scalar_lea.vmem %s7, %s389
        $region60: #{gin_forward.1} parent=39 // pred_fallthru
          _
      $region40: #{gin_forward.1} parent=5 // pred_fallthru
        _
      %p391 = scmp.le.s32.totalorder 1, %s18
      %p392 = scmp.lt.s32.totalorder %s18, 4
      %p393 = pnand %p391, %p392
      %p394 = pneg %p393
      // Predicated region
      $region61: #{gin_forward.1} parent=5 // pred_check
        _
      $region62: #{gin_forward.1} parent=5 // pred_check_branch
        %396 = sbr.rel (%p393) target = $region64
      $region63: #{gin_forward.1} parent=5 // pred_region
        %s397 = ssub.s32 %s18, 1
        %s398 = smul.u32 4, %s28
        %p399 = scmp.lt.s32.totalorder %s398, 3
        %s400 = scalar_select %p399, %s398, 3
        %s401 = smul.addr %s400, 4
        %s402 = scalar_lea.vmem %s0, %s401
        %p403 = pneg %p56
        %p404 = pneg %p53
        %p405 = pneg %p77
        %p406 = pneg %p74
        %p407 = pneg %p98
        %p408 = pneg %p95
        %p409 = scmp.lt.s32.totalorder %s27, 2
        %s410 = scalar_select %p409, %s27, 2
        %s411 = smul.addr %s410, 16
        %s412 = smul.addr %s411, 8
        %s413 = scalar_lea.vmem %s3, %s412
        %p414 = pneg %p124
        %p415 = pneg %p121
        %p416 = scmp.lt.s32.totalorder %s27, 2
        %s417 = scalar_select %p416, %s27, 2
        %s418 = scalar_lea.vmem %s4, %s417
        %p419 = pneg %p150
        %p420 = pneg %p147
        %p421 = scmp.lt.s32.totalorder %s27, 2
        %s422 = scalar_select %p421, %s27, 2
        %s423 = smul.addr %s422, 16
        %s424 = smul.addr %s423, 8
        %s425 = scalar_lea.vmem %s5, %s424
        %p426 = pneg %p176
        %p427 = pneg %p173
        %p428 = scmp.lt.s32.totalorder %s27, 2
        %s429 = scalar_select %p428, %s27, 2
        %s430 = scalar_lea.vmem %s6, %s429
        %p431 = pneg %p202
        %p432 = pneg %p199
        %p433 = scmp.lt.s32.totalorder %s27, 2
        %s434 = scalar_select %p433, %s27, 2
        %s435 = smul.addr %s434, 16
        %s436 = smul.addr %s435, 8
        %s437 = scalar_lea.vmem %s7, %s436
        %p438 = pneg %p228
        %p439 = pneg %p225
        %p440 = pneg %p249
        %p441 = pneg %p246
        %p442 = pneg %p270
        %p443 = pneg %p267
        %p444 = pneg %p291
        %p445 = pneg %p288
        %p446 = pneg %p312
        %p447 = pneg %p309
        %s448 = smul.u32 4, %s28
        %p449 = scmp.lt.s32.totalorder %s448, 3
        %s450 = scalar_select %p449, %s448, 3
        %s451 = smul.addr %s450, 4
        %s452 = scalar_lea.vmem %s0, %s451
        %s453 = smul.u32 4, %s28
        %p454 = scmp.lt.s32.totalorder %s27, 2
        %s455 = scalar_select %p454, %s27, 2
        %s456 = smul.addr %s455, 16
        %s457 = smul.addr %s456, 8
        %s458 = scalar_lea.vmem %s3, %s457
        %p459 = scmp.lt.s32.totalorder %s27, 2
        %s460 = scalar_select %p459, %s27, 2
        %s461 = scalar_lea.vmem %s4, %s460
        %p462 = scmp.lt.s32.totalorder %s27, 2
        %s463 = scalar_select %p462, %s27, 2
        %s464 = smul.addr %s463, 16
        %s465 = smul.addr %s464, 8
        %s466 = scalar_lea.vmem %s5, %s465
        %p467 = scmp.lt.s32.totalorder %s27, 2
        %s468 = scalar_select %p467, %s27, 2
        %s469 = scalar_lea.vmem %s6, %s468
        %p470 = scmp.lt.s32.totalorder %s27, 2
        %s471 = scalar_select %p470, %s27, 2
        %s472 = smul.addr %s471, 16
        %s473 = smul.addr %s472, 8
        %s474 = scalar_lea.vmem %s7, %s473
        %p475 = scmp.eq.s32.totalorder %s27, 0
        %p476 = scmp.eq.s32.totalorder %s28, 0
        %p477 = pnand %p475, %p476
        %p478 = pneg %p477
        // Predicated region
        $region65: #{gin_forward.1} parent=63 // pred_check
          _
        $region66: #{gin_forward.1} parent=63 // pred_check_branch
          %480 = sbr.rel (%p477) target = $region68
        $region67: #{gin_forward.1} parent=63 // pred_region
          %v481 = vld [vmem:[%s1] sm:$0xff]
          %v482 = vld [vmem:[%s1 + $0x8] sm:$0xff]
          %v483 = vld [vmem:[%s1 + $0x10] sm:$0xff]
          %v484 = vld [vmem:[%s1 + $0x18] sm:$0xff]
          %485 = vst [vmem:[#allocation2] sm:$0xff] %v481
          %486 = vst [vmem:[#allocation2 + $0x8] sm:$0xff] %v482
          %487 = vst [vmem:[#allocation2 + $0x10] sm:$0xff] %v483
          %488 = vst [vmem:[#allocation2 + $0x18] sm:$0xff] %v484
          %489 = vst [vmem:[#allocation3] sm:$0x3] 0.0
        $region68: #{gin_forward.1} parent=63 // pred_fallthru
          _
        %p490 = scmp.lt.s32.totalorder %s27, 0
        %s491 = ssub.s32 0, %s27
        %s492 = scalar_select %p490, %s491, %s27
        %s493 = sand.u32 %s492, 1
        %s494 = ssub.s32 0, %s493
        %s495 = scalar_select %p490, %s494, %s493
        %s496 = ssub.s32 1, %s495
        %v497 = vld [vmem:[%s452] sm:$0xf]
        %v498 = vld [vmem:[%s452 + $0x4] sm:$0xf]
        %v499 = vld [vmem:[%s452 + $0x8] sm:$0xf]
        %v500 = vld [vmem:[%s452 + $0xc] sm:$0xf]
        %v501 = vunpack.c.l.bf16 %v497
        %v502 = vunpack.c.l.bf16 %v498
        %v503 = vunpack.c.l.bf16 %v499
        %v504 = vunpack.c.l.bf16 %v500
        %s505 = smul.u32 %s495, 32
        %s506 = scalar_lea.vmem [#allocation2], %s505
        %v507 = vld [vmem:[%s506] sm:$0xff]
        %v508 = vld [vmem:[%s506 + $0x8] sm:$0xff]
        %v509 = vld [vmem:[%s506 + $0x10] sm:$0xff]
        %v510 = vld [vmem:[%s506 + $0x18] sm:$0xff]
        %vm511 = vcmask 261120
        %v513 = vsel %vm511, %v501, 0
        %v516 = vsel %vm511, %v502, 0
        %v519 = vsel %vm511, %v503, 0
        %v522 = vsel %vm511, %v504, 0
        %524 = vmatpush.msra.mxu0 0.0
        %525 = vmatpush.msra.mxu0 0.0
        %526 = vmatpush.msra.mxu0 0.0
        %527 = vmatpush.msra.mxu0 0.0
        %528 = vmatpush.msra.mxu0 0.0
        %529 = vmatpush.msra.mxu0 0.0
        %530 = vmatpush.msra.mxu0 0.0
        %531 = vmatpush.msra.mxu0 0.0
        %532 = vmatpush.msra.mxu0 0.0
        %533 = vmatpush.msra.mxu0 0.0
        %534 = vmatpush.msra.mxu0 0.0
        %535 = vmatpush.msra.mxu0 0.0
        %536 = vmatpush.msra.mxu0 %v510
        %537 = vmatpush.msra.mxu0 %v509
        %538 = vmatpush.msra.mxu0 %v508
        %539 = vmatpush.msra.mxu0 %v507
        %540 = vmatmul.f32.gmra.mxu0 %v513
        %v541 = vpop.f32.mrf.mxu0
        %v542 = vadd.f32 0.0, %v541
        %543 = vmatmul.f32.gmra.mxu0 %v516
        %v544 = vpop.f32.mrf.mxu0
        %v545 = vadd.f32 0.0, %v544
        %546 = vmatmul.f32.gmra.mxu0 %v519
        %v547 = vpop.f32.mrf.mxu0
        %v548 = vadd.f32 0.0, %v547
        %549 = vmatmul.f32.gmra.mxu0 %v522
        %v550 = vpop.f32.mrf.mxu0
        %v551 = vadd.f32 0.0, %v550
        %552 = vdwg.mxu0
        %v553 = vld [vmem:[%s458] sm:$0xff]
        %v554 = vld [vmem:[%s458 + $0x8] sm:$0xff]
        %v555 = vld [vmem:[%s458 + $0x10] sm:$0xff]
        %v556 = vld [vmem:[%s458 + $0x18] sm:$0xff]
        %v557 = vld [vmem:[%s458 + $0x20] sm:$0xff]
        %v558 = vld [vmem:[%s458 + $0x28] sm:$0xff]
        %v559 = vld [vmem:[%s458 + $0x30] sm:$0xff]
        %v560 = vld [vmem:[%s458 + $0x38] sm:$0xff]
        %v561 = vld [vmem:[%s458 + $0x40] sm:$0xff]
        %v562 = vld [vmem:[%s458 + $0x48] sm:$0xff]
        %v563 = vld [vmem:[%s458 + $0x50] sm:$0xff]
        %v564 = vld [vmem:[%s458 + $0x58] sm:$0xff]
        %v565 = vld [vmem:[%s458 + $0x60] sm:$0xff]
        %v566 = vld [vmem:[%s458 + $0x68] sm:$0xff]
        %v567 = vld [vmem:[%s458 + $0x70] sm:$0xff]
        %v568 = vld [vmem:[%s458 + $0x78] sm:$0xff]
        %v569 = vld [vmem:[%s461] sm:$0x1]
        %v571 = vperm.slane %v569, 0
        %573 = vmatpush.msra.mxu0 %v568
        %574 = vmatpush.msra.mxu0 %v567
        %575 = vmatpush.msra.mxu0 %v566
        %576 = vmatpush.msra.mxu0 %v565
        %577 = vmatpush.msra.mxu0 %v564
        %578 = vmatpush.msra.mxu0 %v563
        %579 = vmatpush.msra.mxu0 %v562
        %580 = vmatpush.msra.mxu0 %v561
        %581 = vmatpush.msra.mxu0 %v560
        %582 = vmatpush.msra.mxu0 %v559
        %583 = vmatpush.msra.mxu0 %v558
        %584 = vmatpush.msra.mxu0 %v557
        %585 = vmatpush.msra.mxu0 %v556
        %586 = vmatpush.msra.mxu0 %v555
        %587 = vmatpush.msra.mxu0 %v554
        %588 = vmatpush.msra.mxu0 %v553
        %589 = vmatmul.f32.gmra.mxu0 %v542
        %v590 = vpop.f32.mrf.mxu0
        %v591 = vadd.f32 %v571, %v590
        %592 = vmatmul.f32.gmra.mxu0 %v545
        %v593 = vpop.f32.mrf.mxu0
        %v594 = vadd.f32 %v571, %v593
        %595 = vmatmul.f32.gmra.mxu0 %v548
        %v596 = vpop.f32.mrf.mxu0
        %v597 = vadd.f32 %v571, %v596
        %598 = vmatmul.f32.gmra.mxu0 %v551
        %v599 = vpop.f32.mrf.mxu0
        %v600 = vadd.f32 %v571, %v599
        %601 = vdwg.mxu0
        %v602 = vmax.f32 %v591, 0.0
        %v603 = vmax.f32 %v594, 0.0
        %v604 = vmax.f32 %v597, 0.0
        %v605 = vmax.f32 %v600, 0.0
        %v606 = vld [vmem:[%s466] sm:$0xff]
        %v607 = vld [vmem:[%s466 + $0x8] sm:$0xff]
        %v608 = vld [vmem:[%s466 + $0x10] sm:$0xff]
        %v609 = vld [vmem:[%s466 + $0x18] sm:$0xff]
        %v610 = vld [vmem:[%s466 + $0x20] sm:$0xff]
        %v611 = vld [vmem:[%s466 + $0x28] sm:$0xff]
        %v612 = vld [vmem:[%s466 + $0x30] sm:$0xff]
        %v613 = vld [vmem:[%s466 + $0x38] sm:$0xff]
        %v614 = vld [vmem:[%s466 + $0x40] sm:$0xff]
        %v615 = vld [vmem:[%s466 + $0x48] sm:$0xff]
        %v616 = vld [vmem:[%s466 + $0x50] sm:$0xff]
        %v617 = vld [vmem:[%s466 + $0x58] sm:$0xff]
        %v618 = vld [vmem:[%s466 + $0x60] sm:$0xff]
        %v619 = vld [vmem:[%s466 + $0x68] sm:$0xff]
        %v620 = vld [vmem:[%s466 + $0x70] sm:$0xff]
        %v621 = vld [vmem:[%s466 + $0x78] sm:$0xff]
        %v622 = vld [vmem:[%s469] sm:$0x1]
        %v624 = vperm.slane %v622, 0
        %626 = vmatpush.msra.mxu0 %v621
        %627 = vmatpush.msra.mxu0 %v620
        %628 = vmatpush.msra.mxu0 %v619
        %629 = vmatpush.msra.mxu0 %v618
        %630 = vmatpush.msra.mxu0 %v617
        %631 = vmatpush.msra.mxu0 %v616
        %632 = vmatpush.msra.mxu0 %v615
        %633 = vmatpush.msra.mxu0 %v614
        %634 = vmatpush.msra.mxu0 %v613
        %635 = vmatpush.msra.mxu0 %v612
        %636 = vmatpush.msra.mxu0 %v611
        %637 = vmatpush.msra.mxu0 %v610
        %638 = vmatpush.msra.mxu0 %v609
        %639 = vmatpush.msra.mxu0 %v608
        %640 = vmatpush.msra.mxu0 %v607
        %641 = vmatpush.msra.mxu0 %v606
        %642 = vmatmul.f32.gmra.mxu0 %v602
        %v643 = vpop.f32.mrf.mxu0
        %v644 = vadd.f32 %v624, %v643
        %645 = vmatmul.f32.gmra.mxu0 %v603
        %v646 = vpop.f32.mrf.mxu0
        %v647 = vadd.f32 %v624, %v646
        %648 = vmatmul.f32.gmra.mxu0 %v604
        %v649 = vpop.f32.mrf.mxu0
        %v650 = vadd.f32 %v624, %v649
        %651 = vmatmul.f32.gmra.mxu0 %v605
        %v652 = vpop.f32.mrf.mxu0
        %v653 = vadd.f32 %v624, %v652
        %654 = vdwg.mxu0
        %v655 = vmax.f32 %v644, 0.0
        %v656 = vmax.f32 %v647, 0.0
        %v657 = vmax.f32 %v650, 0.0
        %v658 = vmax.f32 %v653, 0.0
        %s659 = smul.u32 %s28, 32
        %s660 = smul.u32 %s496, 32
        %s661 = sadd.s32 %s659, %s660
        %s662 = scalar_lea.vmem [#allocation2], %s661
        %663 = vst [vmem:[%s662] sm:$0xff] %v655
        %664 = vst [vmem:[%s662 + $0x8] sm:$0xff] %v656
        %665 = vst [vmem:[%s662 + $0x10] sm:$0xff] %v657
        %666 = vst [vmem:[%s662 + $0x18] sm:$0xff] %v658
        // Predicated region
        $region69: #{gin_forward.1} parent=63 // pred_check
          %p667 = pneg %p476
        $region70: #{gin_forward.1} parent=63 // pred_check_branch
          %669 = sbr.rel (%p667) target = $region72
        $region71: #{gin_forward.1} parent=63 // pred_region
          %v670 = vld [vmem:[%s2] sm:$0x3]
          %s671 = scalar_lea.vmem [#allocation2], %s660
          %v672 = vld [vmem:[%s671] sm:$0xff]
          %v673 = vld [vmem:[%s671 + $0x8] sm:$0xff]
          %v674 = vld [vmem:[%s671 + $0x10] sm:$0xff]
          %v675 = vld [vmem:[%s671 + $0x18] sm:$0xff]
          %v677 = vsel %vm511, %v670, 0
          %679 = vmatpush.msra.mxu0 0.0
          %680 = vmatpush.msra.mxu0 0.0
          %681 = vmatpush.msra.mxu0 0.0
          %682 = vmatpush.msra.mxu0 0.0
          %683 = vmatpush.msra.mxu0 0.0
          %684 = vmatpush.msra.mxu0 0.0
          %685 = vmatpush.msra.mxu0 0.0
          %686 = vmatpush.msra.mxu0 0.0
          %687 = vmatpush.msra.mxu0 0.0
          %688 = vmatpush.msra.mxu0 0.0
          %689 = vmatpush.msra.mxu0 0.0
          %690 = vmatpush.msra.mxu0 0.0
          %691 = vmatpush.msra.mxu0 %v675
          %692 = vmatpush.msra.mxu0 %v674
          %693 = vmatpush.msra.mxu0 %v673
          %694 = vmatpush.msra.mxu0 %v672
          %695 = vmatmul.f32.gmra.mxu0 %v677
          %v696 = vpop.f32.mrf.mxu0
          %v697 = vadd.f32 0.0, %v696
          %698 = vdwg.mxu0
          %v699 = vld [vmem:[#allocation3] sm:$0x3]
          %v700 = vld [vmem:[%s474] sm:$0xff]
          %v701 = vld [vmem:[%s474 + $0x8] sm:$0xff]
          %v702 = vld [vmem:[%s474 + $0x10] sm:$0xff]
          %v703 = vld [vmem:[%s474 + $0x18] sm:$0xff]
          %v704 = vld [vmem:[%s474 + $0x20] sm:$0xff]
          %v705 = vld [vmem:[%s474 + $0x28] sm:$0xff]
          %v706 = vld [vmem:[%s474 + $0x30] sm:$0xff]
          %v707 = vld [vmem:[%s474 + $0x38] sm:$0xff]
          %v708 = vld [vmem:[%s474 + $0x40] sm:$0xff]
          %v709 = vld [vmem:[%s474 + $0x48] sm:$0xff]
          %v710 = vld [vmem:[%s474 + $0x50] sm:$0xff]
          %v711 = vld [vmem:[%s474 + $0x58] sm:$0xff]
          %v712 = vld [vmem:[%s474 + $0x60] sm:$0xff]
          %v713 = vld [vmem:[%s474 + $0x68] sm:$0xff]
          %v714 = vld [vmem:[%s474 + $0x70] sm:$0xff]
          %v715 = vld [vmem:[%s474 + $0x78] sm:$0xff]
          %716 = vmatpush.msra.mxu0 %v715
          %717 = vmatpush.msra.mxu0 %v714
          %718 = vmatpush.msra.mxu0 %v713
          %719 = vmatpush.msra.mxu0 %v712
          %720 = vmatpush.msra.mxu0 %v711
          %721 = vmatpush.msra.mxu0 %v710
          %722 = vmatpush.msra.mxu0 %v709
          %723 = vmatpush.msra.mxu0 %v708
          %724 = vmatpush.msra.mxu0 %v707
          %725 = vmatpush.msra.mxu0 %v706
          %726 = vmatpush.msra.mxu0 %v705
          %727 = vmatpush.msra.mxu0 %v704
          %728 = vmatpush.msra.mxu0 %v703
          %729 = vmatpush.msra.mxu0 %v702
          %730 = vmatpush.msra.mxu0 %v701
          %731 = vmatpush.msra.mxu0 %v700
          %732 = vmatmul.f32.gmra.mxu0 %v697
          %v733 = vpop.f32.mrf.mxu0
          %v734 = vadd.f32 0.0, %v733
          %735 = vdwg.mxu0
          %v736 = vadd.f32 %v699, %v734
          %737 = vst [vmem:[#allocation3] sm:$0x3] %v736
        $region72: #{gin_forward.1} parent=63 // pred_fallthru
          _
        %p738 = scmp.eq.s32.totalorder %s27, 2
        %p739 = pnand %p738, %p476
        %p740 = pneg %p739
        // Predicated region
        $region73: #{gin_forward.1} parent=63 // pred_check
          _
        $region74: #{gin_forward.1} parent=63 // pred_check_branch
          %742 = sbr.rel (%p739) target = $region76
        $region75: #{gin_forward.1} parent=63 // pred_region
          %v743 = vld [vmem:[#allocation3] sm:$0x3]
          %v744 = vld [vmem:[%s8] sm:$0x1]
          %v746 = vperm.slane %v744, 0
          %v748 = vadd.f32 %v743, %v746
          %v749 = vmax.f32 %v748, 0.0
          %v750 = vld [vmem:[%s9] sm:$0xff]
          %v751 = vld [vmem:[%s9 + $0x8] sm:$0xff]
          %v752 = vld [vmem:[%s9 + $0x10] sm:$0xff]
          %v753 = vld [vmem:[%s9 + $0x18] sm:$0xff]
          %v754 = vld [vmem:[%s9 + $0x20] sm:$0xff]
          %v755 = vld [vmem:[%s9 + $0x28] sm:$0xff]
          %v756 = vld [vmem:[%s9 + $0x30] sm:$0xff]
          %v757 = vld [vmem:[%s9 + $0x38] sm:$0xff]
          %v758 = vld [vmem:[%s9 + $0x40] sm:$0xff]
          %v759 = vld [vmem:[%s9 + $0x48] sm:$0xff]
          %v760 = vld [vmem:[%s9 + $0x50] sm:$0xff]
          %v761 = vld [vmem:[%s9 + $0x58] sm:$0xff]
          %v762 = vld [vmem:[%s9 + $0x60] sm:$0xff]
          %v763 = vld [vmem:[%s9 + $0x68] sm:$0xff]
          %v764 = vld [vmem:[%s9 + $0x70] sm:$0xff]
          %v765 = vld [vmem:[%s9 + $0x78] sm:$0xff]
          %v766 = vld [vmem:[%s10] sm:$0x1]
          %v768 = vperm.slane %v766, 0
          %770 = vmatpush.msra.mxu0 %v765
          %771 = vmatpush.msra.mxu0 %v764
          %772 = vmatpush.msra.mxu0 %v763
          %773 = vmatpush.msra.mxu0 %v762
          %774 = vmatpush.msra.mxu0 %v761
          %775 = vmatpush.msra.mxu0 %v760
          %776 = vmatpush.msra.mxu0 %v759
          %777 = vmatpush.msra.mxu0 %v758
          %778 = vmatpush.msra.mxu0 %v757
          %779 = vmatpush.msra.mxu0 %v756
          %780 = vmatpush.msra.mxu0 %v755
          %781 = vmatpush.msra.mxu0 %v754
          %782 = vmatpush.msra.mxu0 %v753
          %783 = vmatpush.msra.mxu0 %v752
          %784 = vmatpush.msra.mxu0 %v751
          %785 = vmatpush.msra.mxu0 %v750
          %786 = vmatmul.f32.gmra.mxu0 %v749
          %v787 = vpop.f32.mrf.mxu0
          %v788 = vadd.f32 %v768, %v787
          %789 = vdwg.mxu0
          %790 = vst [vmem:[#allocation4] sm:$0x3] %v788
        $region76: #{gin_forward.1} parent=63 // pred_fallthru
          _
        // Predicated region
        $region77: #{gin_forward.1} parent=63 // pred_check
          %p791 = pneg %p309
        $region78: #{gin_forward.1} parent=63 // pred_check_branch
          %793 = sbr.rel (%p791) target = $region80
        $region79: #{gin_forward.1} parent=63 // pred_region
          %795 = vsyncadd [#allocation5], 0
          %s797 = sshll.u32 [#allocation4], 4
          %s798 = int_to_ptr.vmem [resolvable:$true] %s797
          %s799 = sshll.u32 %s11, 4
          %s800 = int_to_ptr.hbm [resolvable:$true] %s799
          %802 = dma.vmem_to_hbm [thread:$0]  %s798, 32, %s800, [#allocation5]
        $region80: #{gin_forward.1} parent=63 // pred_fallthru
          _
        // Predicated region
        $region81: #{gin_forward.1} parent=63 // pred_check
          %p803 = pneg %p309
        $region82: #{gin_forward.1} parent=63 // pred_check_branch
          %805 = sbr.rel (%p803) target = $region84
        $region83: #{gin_forward.1} parent=63 // pred_region
          %807 = dma.done [#allocation5], 32
        $region84: #{gin_forward.1} parent=63 // pred_fallthru
          _
      $region64: #{gin_forward.1} parent=5 // pred_fallthru
        _
      %p808 = scmp.le.s32.totalorder 2, %s18
      // Predicated region
      $region85: #{gin_forward.1} parent=5 // pred_check
        %p809 = pneg %p808
      $region86: #{gin_forward.1} parent=5 // pred_check_branch
        %811 = sbr.rel (%p809) target = $region88
      $region87: #{gin_forward.1} parent=5 // pred_region
        %s812 = ssub.s32 %s18, 2
      $region88: #{gin_forward.1} parent=5 // pred_fallthru
        _
    $region6: #{gin_forward.1} parent=1 // loop_footer
      %s22 = sadd.s32 1, %s18
    $region7: #{gin_forward.1} parent=1 // loop_footer_branch
      %17 = sbr.rel target = $region3
    $region8: #{gin_forward.1} parent=1 // loop_exit
      _
    %813 = vsyncpa [#allocation5], 1
    %s814 = scalar_lea.sflag [#allocation5], 1
    %815 = vsyncpa %s814, 1

</llo_original>
